<compile_context>
chip_gen: v5e
topology: v5e:2x2
jax: 0.10.0
libtpu: 0.0.40
codegen_flags: <defaults>
</compile_context>

<pallas_src>
import functools
import math

import jax
import jax.numpy as jnp
import numpy as np
from jax import lax
from jax.experimental import pallas as pl
from jax.experimental.pallas import tpu as pltpu


def _rec_sum_kernel(x_ref, rec_ref, part_ref, rec_acc, *, distribution, td,
                    valid_cols, nk_per_part, needs_mask):
    """Per-row reconstruction-loss partial sums.

    Grid: (partition p [parallel], feature-tile k [arbitrary / reduction]).

    x_ref, rec_ref : (Bp, td)     tile of packed X / reconstruction
    part_ref       : (1, Bp, 1)   per-partition partial rec sums (output)
    rec_acc        : (Bp, 1)      VMEM scratch accumulator
    """
    p = pl.program_id(0)
    k = pl.program_id(1)

    @pl.when(k == 0)
    def _():
        rec_acc[...] = jnp.zeros_like(rec_acc)

    x = x_ref[...].astype(jnp.float32)
    r = rec_ref[...].astype(jnp.float32)

    if distribution == "laplace":
        # skssl / disentangling-vae convention: L1 scaled by 3.
        per_elem = 3.0 * jnp.abs(x - r)
    elif distribution == "gaussian":
        # F.mse_loss(rec*255, x*255, reduction='sum') / 255 == 255 * sum((x-r)^2)
        d = x - r
        per_elem = 255.0 * d * d
    elif distribution == "bernoulli":
        # PyTorch F.binary_cross_entropy clamps log terms at -100.
        log_r = jnp.maximum(jnp.log(r), -100.0)
        log_1mr = jnp.maximum(jnp.log(1.0 - r), -100.0)
        per_elem = -(x * log_r + (1.0 - x) * log_1mr)
    else:
        raise ValueError(f"unknown distribution: {distribution}")

    if needs_mask:
        # Tail tiles (and phantom tiles of the last partition) read edge-padded
        # / clamped data; zero out every lane whose logical column >= valid_cols.
        tile_idx = p * nk_per_part + k
        col = tile_idx * td + lax.broadcasted_iota(jnp.int32, per_elem.shape, 1)
        per_elem = jnp.where(col < valid_cols, per_elem, 0.0)

    rec_acc[...] += jnp.sum(per_elem, axis=1, keepdims=True)  # [Bp, 1]

    @pl.when(k == nk_per_part - 1)
    def _():
        acc = rec_acc[...]
        part_ref[...] = acc.reshape((1,) + acc.shape)


def vae_loss(z_sample, z_suff_stat, reconstruct, X, weight=None, *,
             get_beta=lambda _training: 1.0, training=False,
             distribution="laplace", max_tile=2048, num_partitions=2,
             vmem_budget_bytes=16 * 1024 * 1024):
    """JAX/Pallas equivalent of
    VAELoss.forward((z_sample, z_suff_stat, reconstruct), X=X, weight=weight)."""
    del z_sample  # not used by the loss, kept for signature parity

    B = X.shape[0]
    D = int(math.prod(X.shape[1:]))
    assert int(math.prod(reconstruct.shape)) == B * D

    # --- pack small batches into full 8-row sublane groups (free reshape) ---
    m = 1
    if B < 8 and 8 % B == 0 and D % (8 // B) == 0:
        m = 8 // B
    Bp = B * m
    Dm = D // m
    x_flat = X.reshape(Bp, Dm)              # keep caller dtype (bf16 ok)
    rec_flat = reconstruct.reshape(Bp, Dm)

    # --- feature tile sized from the VMEM budget (2 inputs x 2 buffers) ---
    itemsize = int(jnp.dtype(X.dtype).itemsize)
    budget_td = max(int(vmem_budget_bytes // (2 * 2 * Bp * itemsize)), 1)
    td = min(int(max_tile), budget_td, Dm)
    if td >= 128:
        td = (td // 128) * 128              # multiple of 128 lanes
    else:
        td = Dm                             # tiny feature dim: one full block
    n_tiles = -(-Dm // td)                  # cdiv

    # --- parallel partitioning of the reduction (for v7x megacore) ---
    n_parts = num_partitions if n_tiles >= 2 * num_partitions else 1
    nk = -(-n_tiles // n_parts)             # tiles per partition
    needs_mask = (n_parts * nk * td) != Dm  # ragged tail and/or phantom tiles
    last_block = n_tiles - 1

    def in_map(p, k):
        # Clamp phantom tiles to a valid block; their contribution is masked.
        return (0, jnp.minimum(p * nk + k, last_block))

    kernel = functools.partial(
        _rec_sum_kernel, distribution=distribution, td=td, valid_cols=Dm,
        nk_per_part=nk, needs_mask=needs_mask)

    flops = 4 * B * D
    transcendentals = 2 * B * D if distribution == "bernoulli" else 0
    bytes_accessed = 2 * B * D * itemsize + n_parts * Bp * 4

    partials = pl.pallas_call(
        kernel,
        out_shape=jax.ShapeDtypeStruct((n_parts, Bp, 1), jnp.float32),
        grid_spec=pltpu.PrefetchScalarGridSpec(
            num_scalar_prefetch=0,
            grid=(n_parts, nk),
            in_specs=[
                pl.BlockSpec((Bp, td), in_map),   # X tile
                pl.BlockSpec((Bp, td), in_map),   # reconstruct tile
            ],
            out_specs=pl.BlockSpec((1, Bp, 1), lambda p, k: (p, 0, 0)),
            scratch_shapes=[pltpu.VMEM((Bp, 1), jnp.float32)],
        ),
        compiler_params=pltpu.CompilerParams(
            dimension_semantics=("parallel", "arbitrary"),
            vmem_limit_bytes=32 * 1024 * 1024),
        cost_estimate=pl.CostEstimate(
            flops=flops, transcendentals=transcendentals,
            bytes_accessed=bytes_accessed),
    )(x_flat, rec_flat)

    # Combine partition partials and un-pack the sub-rows per example -> [B].
    rec = partials.sum(axis=0).reshape(B, m).sum(axis=1)

    # Tiny epilogue in plain JAX: KL term, weighting, batch mean.
    Z2 = int(math.prod(z_suff_stat.shape[1:]))
    assert Z2 % 2 == 0, "z_suff_stat must carry (mean, logvar) pairs"
    Z = Z2 // 2
    zs = z_suff_stat.reshape(B, Z2).astype(jnp.float32)
    mu, lv = zs[:, :Z], zs[:, Z:]
    kl = 0.5 * jnp.sum(mu * mu + jnp.exp(lv) - 1.0 - lv, axis=1)  # [B]

    beta = float(get_beta(training))
    loss = rec + beta * kl
    if weight is not None:
        loss = loss * weight.reshape(B).astype(jnp.float32)
    return jnp.mean(loss, axis=0)


def _vae_loss_ref(z_suff_stat, reconstruct, X, weight, beta, distribution):
    """Pure-JAX reference for sanity checking."""
    B = X.shape[0]
    x = X.reshape(B, -1).astype(jnp.float32)
    r = reconstruct.reshape(B, -1).astype(jnp.float32)
    if distribution == "laplace":
        rec = 3.0 * jnp.sum(jnp.abs(x - r), axis=1)
    elif distribution == "gaussian":
        rec = 255.0 * jnp.sum((x - r) ** 2, axis=1)
    else:
        log_r = jnp.maximum(jnp.log(r), -100.0)
        log_1mr = jnp.maximum(jnp.log(1.0 - r), -100.0)
        rec = -jnp.sum(x * log_r + (1.0 - x) * log_1mr, axis=1)
    Z = z_suff_stat.shape[-1] // 2
    mu, lv = z_suff_stat[:, :Z], z_suff_stat[:, Z:]
    kl = 0.5 * jnp.sum(mu ** 2 + jnp.exp(lv) - 1.0 - lv, axis=1)
    loss = (rec + beta * kl) * weight
    return jnp.mean(loss, axis=0)


if __name__ == "__main__":
    key = jax.random.PRNGKey(0)
    B, C, H, W, Z = 2, 4, 16, 16, 32
    k1, k2, k3, k4 = jax.random.split(key, 4)

    # Deterministic example inputs (mirrors the shapes a VAE forward produces).
    X = jax.random.uniform(k1, (B, C, H, W), jnp.float32)            # data, NCHW
    reconstruct = jax.random.uniform(k2, (B, C, H, W), jnp.float32)  # decoder output
    z_suff_stat = 0.1 * jax.random.normal(k3, (B, 2 * Z), jnp.float32)
    z_sample = jax.random.normal(k4, (B, Z), jnp.float32)            # unused by loss
    weight = jnp.linspace(0.5, 1.5, B, dtype=jnp.float32)

    # 1) all three likelihood distributions at the canonical small shape.
    for dist in ("laplace", "gaussian", "bernoulli"):
        loss = vae_loss(z_sample, z_suff_stat, reconstruct, X, weight,
                        get_beta=lambda _t: 1.0, distribution=dist)
        jax.block_until_ready(loss)
        ref = _vae_loss_ref(z_suff_stat, reconstruct, X, weight,
                            beta=1.0, distribution=dist)
        np.testing.assert_allclose(np.asarray(loss), np.asarray(ref),
                                   rtol=1e-5, atol=1e-4)

    # 2) ragged feature dim (exercises the cdiv grid + tail lane-mask path).
    kx2, kr2 = jax.random.split(k1)
    X2 = jax.random.uniform(kx2, (B, 3, 20, 20), jnp.float32)
    R2 = jax.random.uniform(kr2, (B, 3, 20, 20), jnp.float32)
    l2 = vae_loss(z_sample, z_suff_stat, R2, X2, weight, distribution="laplace")
    r2 = _vae_loss_ref(z_suff_stat, R2, X2, weight, beta=1.0,
                       distribution="laplace")
    np.testing.assert_allclose(np.asarray(jax.block_until_ready(l2)),
                               np.asarray(r2), rtol=1e-5, atol=1e-4)

    # 3) multi-tile, two-partition grid (exercises the parallel axis).
    kx3, kr3 = jax.random.split(k2)
    X3 = jax.random.uniform(kx3, (B, 4, 32, 32), jnp.float32)
    R3 = jax.random.uniform(kr3, (B, 4, 32, 32), jnp.float32)
    l3 = vae_loss(z_sample, z_suff_stat, R3, X3, weight,
                  distribution="laplace", max_tile=128)
    r3 = _vae_loss_ref(z_suff_stat, R3, X3, weight, beta=1.0,
                       distribution="laplace")
    np.testing.assert_allclose(np.asarray(jax.block_until_ready(l3)),
                               np.asarray(r3), rtol=1e-5, atol=1e-4)

    print("KERNEL_OK")
</pallas_src>

<mosaic_0001>
module attributes {stable_mosaic.version = 11 : i64} {
  func.func @_rec_sum_kernel(%arg0: i32, %arg1: i32, %arg2: memref<8x256xf32, #tpu.memory_space<vmem>>, %arg3: memref<8x256xf32, #tpu.memory_space<vmem>>, %arg4: memref<1x8x1xf32, #tpu.memory_space<vmem>>, %arg5: memref<8x1xf32, #tpu.memory_space<vmem>>) attributes {dimension_semantics = [#tpu.dimension_semantics<parallel>, #tpu.dimension_semantics<arbitrary>], iteration_bounds = array<i64: 1, 1>, scalar_prefetch = 0 : i64, scratch_operands = 1 : i64, tpu.core_type = #tpu.core_type<tc>, window_params = [{transform_indices = @transform_0, window_bounds = array<i64: 8, 256>}, {transform_indices = @transform_1, window_bounds = array<i64: 8, 256>}, {transform_indices = @transform_2, window_bounds = array<i64: 1, 8, 1>}]} {
    %c0_i32 = arith.constant 0 : i32
    %0 = arith.cmpi eq, %arg1, %c0_i32 : i32
    %1 = arith.extui %0 : i1 to i32
    %c0_i32_0 = arith.constant 0 : i32
    %2 = arith.cmpi ne, %1, %c0_i32_0 : i32
    scf.if %2 {
      %cst_11 = arith.constant 0.000000e+00 : f32
      %17 = vector.broadcast %cst_11 : f32 to vector<8x1xf32>
      %c0_12 = arith.constant 0 : index
      %c0_13 = arith.constant 0 : index
      %18 = vector.load %arg5[%c0_12, %c0_13] : memref<8x1xf32, #tpu.memory_space<vmem>>, vector<8x1xf32>
      tpu.vector_store %arg5[%c0_12, %c0_13], %17 {strides = array<i32>} : memref<8x1xf32, #tpu.memory_space<vmem>>, vector<8x1xf32>,
    } else {
    }
    %c0 = arith.constant 0 : index
    %c0_1 = arith.constant 0 : index
    %3 = vector.load %arg2[%c0, %c0_1] : memref<8x256xf32, #tpu.memory_space<vmem>>, vector<8x256xf32>
    %c0_2 = arith.constant 0 : index
    %c0_3 = arith.constant 0 : index
    %4 = vector.load %arg3[%c0_2, %c0_3] : memref<8x256xf32, #tpu.memory_space<vmem>>, vector<8x256xf32>
    %5 = arith.subf %3, %4 : vector<8x256xf32>
    %6 = math.absf %5 : vector<8x256xf32>
    %cst = arith.constant 3.000000e+00 : f32
    %7 = vector.broadcast %cst : f32 to vector<8x256xf32>
    %8 = arith.mulf %7, %6 : vector<8x256xf32>
    %c0_4 = arith.constant 0 : index
    %c0_5 = arith.constant 0 : index
    %9 = vector.load %arg5[%c0_4, %c0_5] : memref<8x1xf32, #tpu.memory_space<vmem>>, vector<8x1xf32>
    %cst_6 = arith.constant dense<0.000000e+00> : vector<8xf32>
    %10 = vector.multi_reduction <add>, %8, %cst_6 [1] : vector<8x256xf32> to vector<8xf32>
    %11 = vector.shape_cast %10 : vector<8xf32> to vector<8x1xf32>
    %12 = arith.addf %9, %11 : vector<8x1xf32>
    %c0_7 = arith.constant 0 : index
    %c0_8 = arith.constant 0 : index
    %13 = vector.load %arg5[%c0_7, %c0_8] : memref<8x1xf32, #tpu.memory_space<vmem>>, vector<8x1xf32>
    tpu.vector_store %arg5[%c0_7, %c0_8], %12 {strides = array<i32>} : memref<8x1xf32, #tpu.memory_space<vmem>>, vector<8x1xf32>,
    %c0_i32_9 = arith.constant 0 : i32
    %14 = arith.cmpi eq, %arg1, %c0_i32_9 : i32
    %15 = arith.extui %14 : i1 to i32
    %c0_i32_10 = arith.constant 0 : i32
    %16 = arith.cmpi ne, %15, %c0_i32_10 : i32
    scf.if %16 {
      %c0_11 = arith.constant 0 : index
      %c0_12 = arith.constant 0 : index
      %17 = vector.load %arg5[%c0_11, %c0_12] : memref<8x1xf32, #tpu.memory_space<vmem>>, vector<8x1xf32>
      %18 = vector.shape_cast %17 : vector<8x1xf32> to vector<1x8x1xf32>
      %c0_13 = arith.constant 0 : index
      %c0_14 = arith.constant 0 : index
      %c0_15 = arith.constant 0 : index
      %19 = vector.load %arg4[%c0_13, %c0_14, %c0_15] : memref<1x8x1xf32, #tpu.memory_space<vmem>>, vector<1x8x1xf32>
      tpu.vector_store %arg4[%c0_13, %c0_14, %c0_15], %18 {strides = array<i32>} : memref<1x8x1xf32, #tpu.memory_space<vmem>>, vector<1x8x1xf32>,
    } else {
    }
    return
  }
  func.func @transform_0(%arg0: i32, %arg1: i32) -> (i32, i32) {
    %c1_i32 = arith.constant 1 : i32
    %0 = arith.muli %arg0, %c1_i32 : i32
    %1 = arith.addi %0, %arg1 : i32
    %c0_i32 = arith.constant 0 : i32
    %2 = arith.minsi %1, %c0_i32 : i32
    %c0_i32_0 = arith.constant 0 : i32
    %c0_i32_1 = arith.constant 0 : i32
    return %c0_i32_0, %2 : i32, i32
  }
  func.func @transform_1(%arg0: i32, %arg1: i32) -> (i32, i32) {
    %c1_i32 = arith.constant 1 : i32
    %0 = arith.muli %arg0, %c1_i32 : i32
    %1 = arith.addi %0, %arg1 : i32
    %c0_i32 = arith.constant 0 : i32
    %2 = arith.minsi %1, %c0_i32 : i32
    %c0_i32_0 = arith.constant 0 : i32
    %c0_i32_1 = arith.constant 0 : i32
    return %c0_i32_0, %2 : i32, i32
  }
  func.func @transform_2(%arg0: i32, %arg1: i32) -> (i32, i32, i32) {
    %c0_i32 = arith.constant 0 : i32
    %c0_i32_0 = arith.constant 0 : i32
    %c0_i32_1 = arith.constant 0 : i32
    return %arg0, %c0_i32, %c0_i32_0 : i32, i32, i32
  }
}

</mosaic_0001>

<llo_original>
// kernel: tpu_custom_call.1
$region0: #{tpu_custom_call.1}
  #allocation0 [shape = 'u32[]', space=smem, size = 0x4, offset = 0x4, fixed_abs, tag = 'smem constant byte address 0x4 - core index']
  #allocation1 [shape = 'u32[72,128]{1,0:T(1,128)}', space=vmem, size = 0x9000, scoped, tag = 'internal scratch']
  #allocation2 [shape = 'f32[8,1]{1,0:T(8,128)}', space=vmem, size = 0x1000, scoped, tag = 'scratch operand']
  %s0 = inlined_call_operand.hbm [shape: f32[8,256], index: 0, kind: input, shape index: {}]
  %s1 = inlined_call_operand.hbm [shape: f32[8,256], index: 1, kind: input, shape index: {}]
  %s2 = inlined_call_operand.vmem [shape: f32[1,8,1], index: 2, kind: output, shape index: {}]
  %s3 = sld [smem:[#allocation0]]
  $region34: #{tpu_custom_call.1} parent=0
    _
  %s5 = ssub.s32 1, %s3
  %s6 = scalar_select 0, %s5, %s3
  $region1: #{tpu_custom_call.1} parent=0
    #allocation3 [shape = 'u8[8192]{0}', space=vmem, size = 0x2000, scoped, tag = 'input window, operand 0, single buffered']
    #allocation4 [shape = 's32[1]{0}', space=sflag, size = 0x4, scoped, tag = 'scoped memory for tpu_custom_call.1']
    #allocation5 [shape = 'u8[8192]{0}', space=vmem, size = 0x2000, scoped, tag = 'input window, operand 1, single buffered']
    #allocation6 [shape = 's32[1]{0}', space=sflag, size = 0x4, scoped, tag = 'scoped memory for tpu_custom_call.1']
    %7 = vsyncpa [#allocation4], 0
    %8 = vsyncpa [#allocation6], 0
    // Predicated region
    $region2: #{tpu_custom_call.1} parent=1 // pred_check
      _
    $region3: #{tpu_custom_call.1} parent=1 // pred_check_branch
      %10 = sbr.rel (0) target = $region5
    $region4: #{tpu_custom_call.1} parent=1 // pred_region
      %s11 = sadd.s32 0, 0
      %p12 = scmp.lt.s32.totalorder %s11, 0
      %s13 = scalar_select %p12, %s11, 0
      %s14 = smul.u32 2, %s13
      %16 = vsyncadd [#allocation4], 0
      %s17 = smul.addr %s14, 8
      %s18 = scalar_lea.hbm %s0, %s17
      %s20 = sshll.u32 %s18, 4
      %s21 = int_to_ptr.hbm [resolvable:$true] %s20
      %s22 = sshll.u32 [#allocation3], 4
      %s23 = int_to_ptr.vmem [resolvable:$true] %s22
      %25 = dma.hbm_to_vmem [thread:$0]  %s21, 256, %s23, [#allocation4]
    $region5: #{tpu_custom_call.1} parent=1 // pred_fallthru
      _
    // Predicated region
    $region6: #{tpu_custom_call.1} parent=1 // pred_check
      _
    $region7: #{tpu_custom_call.1} parent=1 // pred_check_branch
      %27 = sbr.rel (0) target = $region9
    $region8: #{tpu_custom_call.1} parent=1 // pred_region
      %s28 = sadd.s32 0, 0
      %p29 = scmp.lt.s32.totalorder %s28, 0
      %s30 = scalar_select %p29, %s28, 0
      %s31 = smul.u32 2, %s30
      %33 = vsyncadd [#allocation6], 0
      %s34 = smul.addr %s31, 8
      %s35 = scalar_lea.hbm %s1, %s34
      %s37 = sshll.u32 %s35, 4
      %s38 = int_to_ptr.hbm [resolvable:$true] %s37
      %s39 = sshll.u32 [#allocation5], 4
      %s40 = int_to_ptr.vmem [resolvable:$true] %s39
      %42 = dma.hbm_to_vmem [thread:$0]  %s38, 256, %s40, [#allocation6]
    $region9: #{tpu_custom_call.1} parent=1 // pred_fallthru
      _
    // Predicated region
    $region10: #{tpu_custom_call.1} parent=1 // pred_check
      _
    $region11: #{tpu_custom_call.1} parent=1 // pred_check_branch
      %44 = sbr.rel (0) target = $region13
    $region12: #{tpu_custom_call.1} parent=1 // pred_region
      %46 = dma.done [#allocation4], 256
    $region13: #{tpu_custom_call.1} parent=1 // pred_fallthru
      _
    // Predicated region
    $region14: #{tpu_custom_call.1} parent=1 // pred_check
      _
    $region15: #{tpu_custom_call.1} parent=1 // pred_check_branch
      %48 = sbr.rel (0) target = $region17
    $region16: #{tpu_custom_call.1} parent=1 // pred_region
      %50 = dma.done [#allocation6], 256
    $region17: #{tpu_custom_call.1} parent=1 // pred_fallthru
      _
    %s51 = sadd.s32 0, 0
    %p52 = scmp.lt.s32.totalorder %s51, 0
    %s53 = scalar_select %p52, %s51, 0
    %s54 = smul.u32 2, %s53
    %s55 = sadd.s32 0, 0
    %p56 = scmp.lt.s32.totalorder %s55, 0
    %s57 = scalar_select %p56, %s55, 0
    %s58 = smul.u32 2, %s57
    %p59 = scmp.eq.s32.totalorder 0, 0
    // Predicated region
    $region18: #{tpu_custom_call.1} parent=1 // pred_check
      %p60 = pneg %p59
    $region19: #{tpu_custom_call.1} parent=1 // pred_check_branch
      %62 = sbr.rel (%p60) target = $region21
    $region20: #{tpu_custom_call.1} parent=1 // pred_region
      %vm63 = vcmask 7168
      %64 = vst.msk [vmem:[#allocation2] sm:$0xff] %vm63, 0.0
    $region21: #{tpu_custom_call.1} parent=1 // pred_fallthru
      _
    %v65 = vld [vmem:[#allocation3] sm:$0xff]
    %v66 = vld [vmem:[#allocation3 + $0x8] sm:$0xff]
    %v67 = vld [vmem:[#allocation5] sm:$0xff]
    %v68 = vld [vmem:[#allocation5 + $0x8] sm:$0xff]
    %v69 = vsub.f32 %v65, %v67
    %v70 = vsub.f32 %v66, %v68
    %v71 = vand.u32 2147483647, %v69
    %v72 = vand.u32 2147483647, %v70
    %v73 = vmul.f32 %v71, 3.0
    %v74 = vmul.f32 %v72, 3.0
    %v75 = vld [vmem:[#allocation2] sm:$0xff]
    %v76 = vadd.f32 %v73, %v74
    %77 = vadd.xlane.f32.xlu0 %v76
    %v78 = vpop.xlane.xlu0 %77
    %v79 = vadd.f32 %v75, %v78
    %vm80 = vcmask 7168
    %81 = vst.msk [vmem:[#allocation2] sm:$0xff] %vm80, %v79
    // Predicated region
    $region22: #{tpu_custom_call.1} parent=1 // pred_check
      %p82 = pneg %p59
    $region23: #{tpu_custom_call.1} parent=1 // pred_check_branch
      %84 = sbr.rel (%p82) target = $region25
    $region24: #{tpu_custom_call.1} parent=1 // pred_region
      %v85 = vld [vmem:[#allocation2] sm:$0xff]
      %86 = vst.msk [vmem:[%s2] sm:$0xff] %vm80, %v85
    $region25: #{tpu_custom_call.1} parent=1 // pred_fallthru
      _
    // Predicated region
    $region26: #{tpu_custom_call.1} parent=1 // pred_check
      _
    $region27: #{tpu_custom_call.1} parent=1 // pred_check_branch
      %88 = sbr.rel (0) target = $region29
    $region28: #{tpu_custom_call.1} parent=1 // pred_region
      _
    $region29: #{tpu_custom_call.1} parent=1 // pred_fallthru
      _
    // Predicated region
    $region30: #{tpu_custom_call.1} parent=1 // pred_check
      _
    $region31: #{tpu_custom_call.1} parent=1 // pred_check_branch
      %90 = sbr.rel (0) target = $region33
    $region32: #{tpu_custom_call.1} parent=1 // pred_region
      _
    $region33: #{tpu_custom_call.1} parent=1 // pred_fallthru
      _
    %91 = vsyncpa [#allocation4], 1
    %92 = vsyncpa [#allocation6], 1

</llo_original>
